<compile_context>
chip_gen: v7x
topology: tpu7x:2x2x1
jax: 0.10.0
libtpu: 0.0.40
codegen_flags: <defaults>
</compile_context>

<pallas_src>
import math

import jax
import jax.numpy as jnp
from jax.experimental import pallas as pl
from jax.experimental.pallas import tpu as pltpu


# ----------------------------------------------------------------------------
# mid-layer residency: bf16 where the chip has a bf16 VPU, else f32.
# ----------------------------------------------------------------------------
def _mid_dtype_for_device():
    try:
        kind = jax.devices()[0].device_kind.lower()
    except Exception:
        return jnp.float32
    for tag in ("v2", "v3", "v4", "v5"):   # no bf16 VPU/EUP path on these
        if tag in kind:
            return jnp.float32
    return jnp.bfloat16                    # v6e / v7x / newer


# ----------------------------------------------------------------------------
# Pallas kernel: fused per-pixel MLP (all 1x1 convs), pixels on the lane dim.
# ----------------------------------------------------------------------------
def _make_alpha_kernel(order, num_mid, mid_dtype):
    def kernel(xbase_ref, ypat_ref, xs_ref, w0_ref, wm_ref, wl_ref, o_ref):
        i = pl.program_id(0)

        # Reconstruct x (and its powers) for this pixel tile: the within-tile
        # pattern is tile-invariant; the tile offset is a scalar in SMEM.
        # y powers and the constant-1 (homogeneous/bias) row are precomputed.
        x1 = xbase_ref[...] + xs_ref[i]                     # (1, tile) f32
        xrows = [x1]
        xp = x1
        for _ in range(order - 1):
            xp = xp * x1
            xrows.append(xp)
        feats = jnp.concatenate(xrows + [ypat_ref[...]], axis=0)  # (2*order+1, tile)

        # conv0 (+ folded bias) on the MXU; f32 operands keep coordinate
        # precision, accumulation in f32.
        h = jnp.dot(w0_ref[...], feats,
                    preferred_element_type=jnp.float32)     # (width+1, tile)
        h = jnp.maximum(h, 0.0).astype(mid_dtype)

        # conv1..conv{L-2}: bias folded into the augmented bf16 weights, so a
        # middle layer is exactly one MXU matmul + one ReLU pass.
        for l in range(num_mid):
            h = jnp.dot(wm_ref[l], h.astype(jnp.bfloat16),
                        preferred_element_type=mid_dtype)   # (width+1, tile)
            h = jnp.maximum(h, 0.0)

        # final conv (+ folded bias) + sigmoid -> lane-dense (1, tile) row.
        z = jnp.dot(wl_ref[...], h.astype(jnp.bfloat16),
                    preferred_element_type=jnp.float32)     # (1, tile)
        o_ref[...] = jax.nn.sigmoid(z)

    return kernel


# ----------------------------------------------------------------------------
# Tiling: tile = rows_per_tile * size pixels on the lane dim (multiple of 128).
# ----------------------------------------------------------------------------
def _pick_tiling(size, max_tile_pixels=32768):
    rows_per_tile = math.lcm(size, 128) // size            # lane alignment
    while (rows_per_tile * 2 * size <= max_tile_pixels
           and -(-size // (rows_per_tile * 2)) >= 2):       # keep >= 2 steps
        rows_per_tile *= 2
    num_tiles = -(-size // rows_per_tile)                   # cdiv
    return rows_per_tile, rows_per_tile * size, num_tiles


# ----------------------------------------------------------------------------
# Wrapper
# ----------------------------------------------------------------------------
def alpha_forward_pallas(params, *, grid_range=1.0, size=512,
                         max_tile_pixels=32768, mid_dtype=None):
    """Runs the Alpha MLP over the implicit coordinate grid.

    params (math layout from init_params):
      w0 (cin, width), b0 (1, width), wm (num_mid, width, width),
      bm (num_mid, width), wl (width, 1), bl (1, 1).
    Returns the mask with shape (1, 1, size, size), float32.
    """
    w0, b0, wm, bm, wl, bl = params
    cin, width = w0.shape
    order = cin // 2
    num_mid = wm.shape[0]
    assert num_mid >= 1, "alpha_forward_pallas needs num_layers >= 3"
    P = size * size
    if mid_dtype is None:
        mid_dtype = _mid_dtype_for_device()

    rows_per_tile, tile, num_tiles = _pick_tiling(size, max_tile_pixels)
    P_pad = num_tiles * tile

    # --- tile-invariant coordinate patterns (tiny, built once) -------------
    coord = jnp.linspace(-grid_range, grid_range, size, dtype=jnp.float32)
    lane = jnp.arange(tile, dtype=jnp.int32)
    local_row = jnp.minimum(lane // size, size - 1)
    col = lane % size
    xbase = coord[local_row].reshape(1, tile)               # x of tile 0 (exact)
    yc = coord[col]
    ypat = jnp.stack([yc ** p for p in range(1, order + 1)]
                     + [jnp.ones((tile,), jnp.float32)],
                     axis=0)                                # (order+1, tile)
    # per-tile x offset (SMEM scalar): exact for tile 0, ~1 ulp for the rest.
    row0 = jnp.arange(num_tiles, dtype=jnp.int32) * rows_per_tile
    x_shift = coord[row0] - coord[0]                        # (num_tiles,) f32

    # --- homogeneous (bias-folded) weights, (C_out, C_in) layout -----------
    # kernel feature order: [x, x^2, .., x^order, y, y^2, .., y^order, 1]
    perm = list(range(0, cin, 2)) + list(range(1, cin, 2))
    w0_t = jnp.transpose(w0)[:, perm]                       # (width, cin) f32
    w0_aug = jnp.concatenate(
        [jnp.concatenate([w0_t, jnp.reshape(b0, (width, 1))], axis=1),
         jnp.concatenate([jnp.zeros((1, cin), jnp.float32),
                          jnp.ones((1, 1), jnp.float32)], axis=1)],
        axis=0)                                             # (width+1, cin+1)

    wm_t = jnp.transpose(wm, (0, 2, 1))                     # (nm, out, in)
    bottom = jnp.concatenate([jnp.zeros((num_mid, 1, width), jnp.float32),
                              jnp.ones((num_mid, 1, 1), jnp.float32)], axis=2)
    wm_aug = jnp.concatenate(
        [jnp.concatenate([wm_t, bm[..., None]], axis=2), bottom],
        axis=1).astype(jnp.bfloat16)                        # (nm, w+1, w+1)

    wl_aug = jnp.concatenate([jnp.transpose(wl), jnp.reshape(bl, (1, 1))],
                             axis=1).astype(jnp.bfloat16)   # (1, w+1)

    kernel = _make_alpha_kernel(order, num_mid, mid_dtype)
    out = pl.pallas_call(
        kernel,
        out_shape=jax.ShapeDtypeStruct((1, P_pad), jnp.float32),
        grid=(num_tiles,),
        in_specs=[
            pl.BlockSpec((1, tile), lambda i: (0, 0)),                   # xbase
            pl.BlockSpec((order + 1, tile), lambda i: (0, 0)),           # y pows + 1
            pl.BlockSpec(memory_space=pltpu.MemorySpace.SMEM),           # x shift
            pl.BlockSpec((width + 1, cin + 1), lambda i: (0, 0)),        # w0_aug
            pl.BlockSpec((num_mid, width + 1, width + 1),
                         lambda i: (0, 0, 0)),                           # wm_aug
            pl.BlockSpec((1, width + 1), lambda i: (0, 0)),              # wl_aug
        ],
        out_specs=pl.BlockSpec((1, tile), lambda i: (0, i)),
        compiler_params=pltpu.CompilerParams(
            dimension_semantics=("parallel",)),
    )(xbase, ypat, x_shift, w0_aug, wm_aug, wl_aug)

    return out[0, :P].reshape(1, 1, size, size)


# ----------------------------------------------------------------------------
# Deterministic parameter init (synthetic; matches Conv2d 1x1 shapes)
# ----------------------------------------------------------------------------
def init_params(key, num_layers, layer_width, order):
    cin0 = 2 * order
    num_mid = num_layers - 2
    keys = jax.random.split(key, 2 * num_layers)

    def linit(k, fan_in, fan_out):
        bound = 1.0 / jnp.sqrt(fan_in)
        return jax.random.uniform(k, (fan_in, fan_out), jnp.float32,
                                  -bound, bound)

    w0 = linit(keys[0], cin0, layer_width)
    b0 = jax.random.uniform(keys[1], (1, layer_width), jnp.float32,
                            -1.0 / jnp.sqrt(cin0), 1.0 / jnp.sqrt(cin0))
    wm = jnp.stack([linit(keys[2 + 2 * i], layer_width, layer_width)
                    for i in range(num_mid)], axis=0)
    bm = jnp.stack([jax.random.uniform(keys[3 + 2 * i], (layer_width,),
                                       jnp.float32,
                                       -1.0 / jnp.sqrt(layer_width),
                                       1.0 / jnp.sqrt(layer_width))
                    for i in range(num_mid)], axis=0)
    wl = linit(keys[-2], layer_width, 1)
    bl = jax.random.uniform(keys[-1], (1, 1), jnp.float32,
                            -1.0 / jnp.sqrt(layer_width),
                            1.0 / jnp.sqrt(layer_width))
    return w0, b0, wm, bm, wl, bl


# ----------------------------------------------------------------------------
# Pure-JAX f32 reference (mirrors the PyTorch module)
# ----------------------------------------------------------------------------
def alpha_forward_ref(params, *, grid_range=1.0, size=512):
    w0, b0, wm, bm, wl, bl = params
    cin = w0.shape[0]
    order = cin // 2
    coord = jnp.linspace(-grid_range, grid_range, size, dtype=jnp.float32)
    x = jnp.tile(coord.reshape(-1, 1), (1, size))   # x[i, j] = coord[i]
    y = jnp.tile(coord.reshape(1, -1), (size, 1))   # y[i, j] = coord[j]
    chans = [x, y]
    for p in range(2, order + 1):
        chans.append(x ** p)
        chans.append(y ** p)
    g = jnp.stack(chans, axis=0).reshape(cin, size * size).T   # (P, cin)
    h = jnp.maximum(g @ w0 + b0, 0.0)
    for i in range(wm.shape[0]):
        h = jnp.maximum(h @ wm[i] + bm[i][None, :], 0.0)
    z = h @ wl + bl
    return jax.nn.sigmoid(z).reshape(1, 1, size, size)


if __name__ == "__main__":
    # Small shapes: size=16 (-> 256 pixels, 2 grid tiles), layer_width=24,
    # num_layers=8, order=2.  Defaults path: pass_radius=False, add_dropout=False.
    size = 16
    num_layers = 8
    layer_width = 24
    order = 2
    grid_range = 1.0

    params = init_params(jax.random.PRNGKey(0), num_layers, layer_width, order)
    ref = alpha_forward_ref(params, grid_range=grid_range, size=size)

    # f32-resident middle layers (the path v5e-class chips take).
    mask_f32 = alpha_forward_pallas(params, grid_range=grid_range, size=size,
                                    mid_dtype=jnp.float32)
    mask_f32 = jax.block_until_ready(mask_f32)
    assert mask_f32.shape == (1, 1, size, size)
    # bf16 MXU weights (f32 accumulate) -> tolerance loosened vs pure-f32 ref.
    assert jnp.allclose(mask_f32, ref, atol=1e-2), "f32-path mismatch vs reference"

    # Default path: bf16-resident middle layers on v6e/v7x, f32 elsewhere.
    mask = alpha_forward_pallas(params, grid_range=grid_range, size=size)
    mask = jax.block_until_ready(mask)
    assert mask.shape == (1, 1, size, size)
    assert jnp.allclose(mask, ref, atol=2.5e-2), "mismatch vs reference"

    print("KERNEL_OK")
</pallas_src>

<mosaic_0001>
module attributes {stable_mosaic.version = 11 : i64} {
  func.func @kernel(%arg0: i32, %arg1: memref<1x128xf32, #tpu.memory_space<vmem>>, %arg2: memref<3x128xf32, #tpu.memory_space<vmem>>, %arg3: memref<2xf32, #tpu.memory_space<smem>>, %arg4: memref<25x5xf32, #tpu.memory_space<vmem>>, %arg5: memref<6x25x25xbf16, #tpu.memory_space<vmem>>, %arg6: memref<1x25xbf16, #tpu.memory_space<vmem>>, %arg7: memref<1x128xf32, #tpu.memory_space<vmem>>) attributes {dimension_semantics = [#tpu.dimension_semantics<parallel>], iteration_bounds = array<i64: 2>, scalar_prefetch = 0 : i64, scratch_operands = 0 : i64, tpu.core_type = #tpu.core_type<tc>, window_params = [{pipeline_mode = #tpu.pipeline_mode<synchronous>, transform_indices = @transform_0, window_bounds = array<i64: 1, 128>}, {pipeline_mode = #tpu.pipeline_mode<synchronous>, transform_indices = @transform_1, window_bounds = array<i64: 3, 128>}, {transform_indices = @transform_2, window_bounds = array<i64: 2>}, {pipeline_mode = #tpu.pipeline_mode<synchronous>, transform_indices = @transform_3, window_bounds = array<i64: 25, 5>}, {pipeline_mode = #tpu.pipeline_mode<synchronous>, transform_indices = @transform_4, window_bounds = array<i64: 6, 25, 25>}, {pipeline_mode = #tpu.pipeline_mode<synchronous>, transform_indices = @transform_5, window_bounds = array<i64: 1, 25>}, {transform_indices = @transform_6, window_bounds = array<i64: 1, 128>}]} {
    %c0 = arith.constant 0 : index
    %c0_0 = arith.constant 0 : index
    %0 = vector.load %arg1[%c0, %c0_0] : memref<1x128xf32, #tpu.memory_space<vmem>>, vector<1x128xf32>
    %1 = arith.index_cast %arg0 : i32 to index
    %2 = memref.load %arg3[%1] : memref<2xf32, #tpu.memory_space<smem>>
    %3 = vector.broadcast %2 : f32 to vector<1x128xf32>
    %4 = arith.addf %0, %3 : vector<1x128xf32>
    %5 = arith.mulf %4, %4 : vector<1x128xf32>
    %c0_1 = arith.constant 0 : index
    %c0_2 = arith.constant 0 : index
    %6 = vector.load %arg2[%c0_1, %c0_2] : memref<3x128xf32, #tpu.memory_space<vmem>>, vector<3x128xf32>
    %7 = tpu.concatenate %4, %5, %6 in 0 : vector<1x128xf32>, vector<1x128xf32>, vector<3x128xf32> -> vector<5x128xf32>
    %c0_3 = arith.constant 0 : index
    %c0_4 = arith.constant 0 : index
    %8 = vector.load %arg4[%c0_3, %c0_4] : memref<25x5xf32, #tpu.memory_space<vmem>>, vector<25x5xf32>
    %cst = arith.constant dense<0.000000e+00> : vector<25x128xf32>
    %9 = tpu.matmul %8, %7, %cst {dimension_numbers = #tpu.dot_dimension_numbers<[1], [0], [0], [1], [0, 0, 1, 1], [], []>} : vector<25x5xf32>, vector<5x128xf32>, vector<25x128xf32> -> vector<25x128xf32>
    %cst_5 = arith.constant 0.000000e+00 : f32
    %10 = vector.broadcast %cst_5 : f32 to vector<25x128xf32>
    %11 = arith.maximumf %9, %10 : vector<25x128xf32>
    %c0_6 = arith.constant 0 : index
    %c0_7 = arith.constant 0 : index
    %c0_8 = arith.constant 0 : index
    %12 = vector.load %arg5[%c0_6, %c0_7, %c0_8] : memref<6x25x25xbf16, #tpu.memory_space<vmem>>, vector<1x25x25xbf16>
    %13 = vector.shape_cast %12 : vector<1x25x25xbf16> to vector<25x25xbf16>
    %14 = arith.truncf %11 : vector<25x128xf32> to vector<25x128xbf16>
    %cst_9 = arith.constant dense<0.000000e+00> : vector<25x128xf32>
    %15 = tpu.matmul %13, %14, %cst_9 {dimension_numbers = #tpu.dot_dimension_numbers<[1], [0], [0], [1], [0, 0, 1, 1], [], []>} : vector<25x25xbf16>, vector<25x128xbf16>, vector<25x128xf32> -> vector<25x128xf32>
    %cst_10 = arith.constant 0.000000e+00 : f32
    %16 = vector.broadcast %cst_10 : f32 to vector<25x128xf32>
    %17 = arith.maximumf %15, %16 : vector<25x128xf32>
    %c1 = arith.constant 1 : index
    %c0_11 = arith.constant 0 : index
    %c0_12 = arith.constant 0 : index
    %18 = vector.load %arg5[%c1, %c0_11, %c0_12] : memref<6x25x25xbf16, #tpu.memory_space<vmem>>, vector<1x25x25xbf16>
    %19 = vector.shape_cast %18 : vector<1x25x25xbf16> to vector<25x25xbf16>
    %20 = arith.truncf %17 : vector<25x128xf32> to vector<25x128xbf16>
    %cst_13 = arith.constant dense<0.000000e+00> : vector<25x128xf32>
    %21 = tpu.matmul %19, %20, %cst_13 {dimension_numbers = #tpu.dot_dimension_numbers<[1], [0], [0], [1], [0, 0, 1, 1], [], []>} : vector<25x25xbf16>, vector<25x128xbf16>, vector<25x128xf32> -> vector<25x128xf32>
    %cst_14 = arith.constant 0.000000e+00 : f32
    %22 = vector.broadcast %cst_14 : f32 to vector<25x128xf32>
    %23 = arith.maximumf %21, %22 : vector<25x128xf32>
    %c2 = arith.constant 2 : index
    %c0_15 = arith.constant 0 : index
    %c0_16 = arith.constant 0 : index
    %24 = vector.load %arg5[%c2, %c0_15, %c0_16] : memref<6x25x25xbf16, #tpu.memory_space<vmem>>, vector<1x25x25xbf16>
    %25 = vector.shape_cast %24 : vector<1x25x25xbf16> to vector<25x25xbf16>
    %26 = arith.truncf %23 : vector<25x128xf32> to vector<25x128xbf16>
    %cst_17 = arith.constant dense<0.000000e+00> : vector<25x128xf32>
    %27 = tpu.matmul %25, %26, %cst_17 {dimension_numbers = #tpu.dot_dimension_numbers<[1], [0], [0], [1], [0, 0, 1, 1], [], []>} : vector<25x25xbf16>, vector<25x128xbf16>, vector<25x128xf32> -> vector<25x128xf32>
    %cst_18 = arith.constant 0.000000e+00 : f32
    %28 = vector.broadcast %cst_18 : f32 to vector<25x128xf32>
    %29 = arith.maximumf %27, %28 : vector<25x128xf32>
    %c3 = arith.constant 3 : index
    %c0_19 = arith.constant 0 : index
    %c0_20 = arith.constant 0 : index
    %30 = vector.load %arg5[%c3, %c0_19, %c0_20] : memref<6x25x25xbf16, #tpu.memory_space<vmem>>, vector<1x25x25xbf16>
    %31 = vector.shape_cast %30 : vector<1x25x25xbf16> to vector<25x25xbf16>
    %32 = arith.truncf %29 : vector<25x128xf32> to vector<25x128xbf16>
    %cst_21 = arith.constant dense<0.000000e+00> : vector<25x128xf32>
    %33 = tpu.matmul %31, %32, %cst_21 {dimension_numbers = #tpu.dot_dimension_numbers<[1], [0], [0], [1], [0, 0, 1, 1], [], []>} : vector<25x25xbf16>, vector<25x128xbf16>, vector<25x128xf32> -> vector<25x128xf32>
    %cst_22 = arith.constant 0.000000e+00 : f32
    %34 = vector.broadcast %cst_22 : f32 to vector<25x128xf32>
    %35 = arith.maximumf %33, %34 : vector<25x128xf32>
    %c4 = arith.constant 4 : index
    %c0_23 = arith.constant 0 : index
    %c0_24 = arith.constant 0 : index
    %36 = vector.load %arg5[%c4, %c0_23, %c0_24] : memref<6x25x25xbf16, #tpu.memory_space<vmem>>, vector<1x25x25xbf16>
    %37 = vector.shape_cast %36 : vector<1x25x25xbf16> to vector<25x25xbf16>
    %38 = arith.truncf %35 : vector<25x128xf32> to vector<25x128xbf16>
    %cst_25 = arith.constant dense<0.000000e+00> : vector<25x128xf32>
    %39 = tpu.matmul %37, %38, %cst_25 {dimension_numbers = #tpu.dot_dimension_numbers<[1], [0], [0], [1], [0, 0, 1, 1], [], []>} : vector<25x25xbf16>, vector<25x128xbf16>, vector<25x128xf32> -> vector<25x128xf32>
    %cst_26 = arith.constant 0.000000e+00 : f32
    %40 = vector.broadcast %cst_26 : f32 to vector<25x128xf32>
    %41 = arith.maximumf %39, %40 : vector<25x128xf32>
    %c5 = arith.constant 5 : index
    %c0_27 = arith.constant 0 : index
    %c0_28 = arith.constant 0 : index
    %42 = vector.load %arg5[%c5, %c0_27, %c0_28] : memref<6x25x25xbf16, #tpu.memory_space<vmem>>, vector<1x25x25xbf16>
    %43 = vector.shape_cast %42 : vector<1x25x25xbf16> to vector<25x25xbf16>
    %44 = arith.truncf %41 : vector<25x128xf32> to vector<25x128xbf16>
    %cst_29 = arith.constant dense<0.000000e+00> : vector<25x128xf32>
    %45 = tpu.matmul %43, %44, %cst_29 {dimension_numbers = #tpu.dot_dimension_numbers<[1], [0], [0], [1], [0, 0, 1, 1], [], []>} : vector<25x25xbf16>, vector<25x128xbf16>, vector<25x128xf32> -> vector<25x128xf32>
    %cst_30 = arith.constant 0.000000e+00 : f32
    %46 = vector.broadcast %cst_30 : f32 to vector<25x128xf32>
    %47 = arith.maximumf %45, %46 : vector<25x128xf32>
    %c0_31 = arith.constant 0 : index
    %c0_32 = arith.constant 0 : index
    %48 = vector.load %arg6[%c0_31, %c0_32] : memref<1x25xbf16, #tpu.memory_space<vmem>>, vector<1x25xbf16>
    %49 = arith.truncf %47 : vector<25x128xf32> to vector<25x128xbf16>
    %cst_33 = arith.constant dense<0.000000e+00> : vector<1x128xf32>
    %50 = tpu.matmul %48, %49, %cst_33 {dimension_numbers = #tpu.dot_dimension_numbers<[1], [0], [0], [1], [0, 0, 1, 1], [], []>} : vector<1x25xbf16>, vector<25x128xbf16>, vector<1x128xf32> -> vector<1x128xf32>
    %51 = arith.negf %50 : vector<1x128xf32>
    %52 = math.exp %51 : vector<1x128xf32>
    %cst_34 = arith.constant 1.000000e+00 : f32
    %53 = vector.broadcast %cst_34 : f32 to vector<1x128xf32>
    %54 = arith.addf %53, %52 : vector<1x128xf32>
    %55 = arith.divf %53, %54 : vector<1x128xf32>
    %c0_35 = arith.constant 0 : index
    %c0_36 = arith.constant 0 : index
    %56 = vector.load %arg7[%c0_35, %c0_36] : memref<1x128xf32, #tpu.memory_space<vmem>>, vector<1x128xf32>
    tpu.vector_store %arg7[%c0_35, %c0_36], %55 {strides = array<i32>} : memref<1x128xf32, #tpu.memory_space<vmem>>, vector<1x128xf32>,
    return
  }
  func.func @transform_0(%arg0: i32) -> (i32, i32) {
    %c0_i32 = arith.constant 0 : i32
    %c0_i32_0 = arith.constant 0 : i32
    %c0_i32_1 = arith.constant 0 : i32
    return %c0_i32, %c0_i32_0 : i32, i32
  }
  func.func @transform_1(%arg0: i32) -> (i32, i32) {
    %c0_i32 = arith.constant 0 : i32
    %c0_i32_0 = arith.constant 0 : i32
    %c0_i32_1 = arith.constant 0 : i32
    return %c0_i32, %c0_i32_0 : i32, i32
  }
  func.func @transform_2(%arg0: i32) -> i32 {
    %c0_i32 = arith.constant 0 : i32
    %c0_i32_0 = arith.constant 0 : i32
    return %c0_i32 : i32
  }
  func.func @transform_3(%arg0: i32) -> (i32, i32) {
    %c0_i32 = arith.constant 0 : i32
    %c0_i32_0 = arith.constant 0 : i32
    %c0_i32_1 = arith.constant 0 : i32
    return %c0_i32, %c0_i32_0 : i32, i32
  }
  func.func @transform_4(%arg0: i32) -> (i32, i32, i32) {
    %c0_i32 = arith.constant 0 : i32
    %c0_i32_0 = arith.constant 0 : i32
    %c0_i32_1 = arith.constant 0 : i32
    %c0_i32_2 = arith.constant 0 : i32
    return %c0_i32, %c0_i32_0, %c0_i32_1 : i32, i32, i32
  }
  func.func @transform_5(%arg0: i32) -> (i32, i32) {
    %c0_i32 = arith.constant 0 : i32
    %c0_i32_0 = arith.constant 0 : i32
    %c0_i32_1 = arith.constant 0 : i32
    return %c0_i32, %c0_i32_0 : i32, i32
  }
  func.func @transform_6(%arg0: i32) -> (i32, i32) {
    %c0_i32 = arith.constant 0 : i32
    %c0_i32_0 = arith.constant 0 : i32
    return %c0_i32, %arg0 : i32, i32
  }
}

</mosaic_0001>

<llo_original>
// kernel: tpu_custom_call.1
$region0: #{tpu_custom_call.1}
  #allocation0 [shape = 'u32[]', space=smem, size = 0x4, offset = 0x4, fixed_abs, tag = 'smem constant byte address 0x4 - core index']
  #allocation1 [shape = 'u32[144,128]{1,0:T(1,128)}', space=vmem, size = 0x12000, scoped, tag = 'internal scratch']
  %s0 = inlined_call_operand.vmem [shape: f32[1,128], index: 0, kind: input, shape index: {}]
  %s1 = inlined_call_operand.vmem [shape: f32[3,128], index: 1, kind: input, shape index: {}]
  %s2 = inlined_call_operand.vmem [shape: f32[2], index: 2, kind: input, shape index: {}]
  %s3 = inlined_call_operand.vmem [shape: f32[25,5], index: 3, kind: input, shape index: {}]
  %s4 = inlined_call_operand.hbm [shape: bf16[6,25,25], index: 4, kind: input, shape index: {}]
  %s5 = inlined_call_operand.vmem [shape: bf16[1,25], index: 5, kind: input, shape index: {}]
  %s6 = inlined_call_operand.hbm [shape: f32[1,256], index: 6, kind: output, shape index: {}]
  %s7 = sld [smem:[#allocation0]]
  $region65: #{tpu_custom_call.1} parent=0
    _
  %s9 = ssub.s32 1, %s7
  %s10 = scalar_select 0, %s9, %s7
  $region1: #{tpu_custom_call.1} parent=0
    #allocation2 [shape = 'u8[512]{0}', space=smem, size = 0x200, scoped, tag = 'input window, operand 2, single buffered']
    #allocation3 [shape = 's32[2]{0}', space=sflag, size = 0x8, scoped, tag = 'scoped memory for tpu_custom_call.1']
    #allocation4 [shape = 's32[2]{0}', space=sflag, size = 0x8, scoped, tag = 'scoped memory for tpu_custom_call.1']
    #allocation5 [shape = 's32[2]{0}', space=sflag, size = 0x8, scoped, tag = 'scoped memory for tpu_custom_call.1']
    #allocation6 [shape = 'u8[49152]{0}', space=vmem, size = 0xc000, scoped, tag = 'input window, operand 4, single buffered']
    #allocation7 [shape = 'u8[1024]{0}', space=vmem, size = 0x400, scoped, tag = 'output window, operand 0']
    %11 = vsyncpa [#allocation5], 0
    %12 = vsyncpa [#allocation3], 0
    %13 = vsyncpa [#allocation4], 0
    %s14 = scalar_lea.sflag [#allocation4], 1
    %15 = vsyncpa %s14, 0
    loop: start=0, step=1, limit=4
    $region2: #{tpu_custom_call.1} parent=1 // loop_pre_header
      _
    $region3: #{tpu_custom_call.1} parent=1 // loop_header
      %s17 = sphi 0, %s21
      %p18 = scmp.ge.s32.totalorder %s17, 4
      %s25 = sphi 0, %s25
      %s27 = sphi 0, %s25
      %s28 = sphi 0, %s27
      %s42 = sphi 0, %s28
      %s46 = sphi 0, %s46
      %s48 = sphi 0, %s46
      %s49 = sphi 0, %s48
      %s63 = sphi 0, %s49
      %s67 = sphi 0, %s67
      %s69 = sphi 0, %s67
      %s70 = sphi 0, %s69
      %s84 = sphi 0, %s70
      %s88 = sphi 0, %s88
      %s90 = sphi 0, %s88
      %s91 = sphi 0, %s90
      %s105 = sphi 0, %s91
      %s109 = sphi 0, %s109
      %s111 = sphi 0, %s109
      %s112 = sphi 0, %s111
      %s126 = sphi 0, %s112
      %s130 = sphi 0, %s130
      %s132 = sphi 0, %s130
      %s133 = sphi 0, %s132
      %s147 = sphi 0, %s133
      %s153 = sphi 0, %s155
      %s156 = sphi 0, %s153
      %s157 = sphi 0, %s156
      %s173 = sphi 0, %s157
    $region4: #{tpu_custom_call.1} parent=1 // loop_header_branch
      %20 = sbr.rel (%p18) target = $region8
    $region5: #{tpu_custom_call.1} parent=1 // loop_body
      %s22 = ssub.s32 %s17, 1
      %s23 = ssub.s32 %s17, 2
      %s24 = sadd.s32 %s17, 1
      %s26 = sadd.s32 %s25, 1
      %p29 = scmp.eq.s32.totalorder %s17, 1
      %p30 = scmp.ne.s32.totalorder %s25, %s27
      %p31 = scmp.eq.s32.totalorder %s17, 0
      %p32 = por %p30, %p31
      %p33 = scmp.ne.s32.totalorder %s25, %s27
      %p34 = scmp.eq.s32.totalorder %s22, 1
      %p35 = por %p33, %p34
      %p36 = scmp.ne.s32.totalorder %s27, %s28
      %p37 = scmp.eq.s32.totalorder %s22, 0
      %p38 = por %p36, %p37
      %p39 = scmp.ne.s32.totalorder %s27, %s28
      %p40 = scmp.eq.s32.totalorder %s23, 1
      %p41 = por %p39, %p40
      %p43 = scmp.ne.s32.totalorder %s28, %s42
      %p44 = scmp.eq.s32.totalorder %s23, 0
      %p45 = por %p43, %p44
      %s47 = sadd.s32 %s46, 1
      %p50 = scmp.eq.s32.totalorder %s17, 1
      %p51 = scmp.ne.s32.totalorder %s46, %s48
      %p52 = scmp.eq.s32.totalorder %s17, 0
      %p53 = por %p51, %p52
      %p54 = scmp.ne.s32.totalorder %s46, %s48
      %p55 = scmp.eq.s32.totalorder %s22, 1
      %p56 = por %p54, %p55
      %p57 = scmp.ne.s32.totalorder %s48, %s49
      %p58 = scmp.eq.s32.totalorder %s22, 0
      %p59 = por %p57, %p58
      %p60 = scmp.ne.s32.totalorder %s48, %s49
      %p61 = scmp.eq.s32.totalorder %s23, 1
      %p62 = por %p60, %p61
      %p64 = scmp.ne.s32.totalorder %s49, %s63
      %p65 = scmp.eq.s32.totalorder %s23, 0
      %p66 = por %p64, %p65
      %s68 = sadd.s32 %s67, 1
      %p71 = scmp.eq.s32.totalorder %s17, 1
      %p72 = scmp.ne.s32.totalorder %s67, %s69
      %p73 = scmp.eq.s32.totalorder %s17, 0
      %p74 = por %p72, %p73
      %p75 = scmp.ne.s32.totalorder %s67, %s69
      %p76 = scmp.eq.s32.totalorder %s22, 1
      %p77 = por %p75, %p76
      %p78 = scmp.ne.s32.totalorder %s69, %s70
      %p79 = scmp.eq.s32.totalorder %s22, 0
      %p80 = por %p78, %p79
      %p81 = scmp.ne.s32.totalorder %s69, %s70
      %p82 = scmp.eq.s32.totalorder %s23, 1
      %p83 = por %p81, %p82
      %p85 = scmp.ne.s32.totalorder %s70, %s84
      %p86 = scmp.eq.s32.totalorder %s23, 0
      %p87 = por %p85, %p86
      %s89 = sadd.s32 %s88, 1
      %p92 = scmp.eq.s32.totalorder %s17, 1
      %p93 = scmp.ne.s32.totalorder %s88, %s90
      %p94 = scmp.eq.s32.totalorder %s17, 0
      %p95 = por %p93, %p94
      %p96 = scmp.ne.s32.totalorder %s88, %s90
      %p97 = scmp.eq.s32.totalorder %s22, 1
      %p98 = por %p96, %p97
      %p99 = scmp.ne.s32.totalorder %s90, %s91
      %p100 = scmp.eq.s32.totalorder %s22, 0
      %p101 = por %p99, %p100
      %p102 = scmp.ne.s32.totalorder %s90, %s91
      %p103 = scmp.eq.s32.totalorder %s23, 1
      %p104 = por %p102, %p103
      %p106 = scmp.ne.s32.totalorder %s91, %s105
      %p107 = scmp.eq.s32.totalorder %s23, 0
      %p108 = por %p106, %p107
      %s110 = sadd.s32 %s109, 1
      %p113 = scmp.eq.s32.totalorder %s17, 1
      %p114 = scmp.ne.s32.totalorder %s109, %s111
      %p115 = scmp.eq.s32.totalorder %s17, 0
      %p116 = por %p114, %p115
      %p117 = scmp.ne.s32.totalorder %s109, %s111
      %p118 = scmp.eq.s32.totalorder %s22, 1
      %p119 = por %p117, %p118
      %p120 = scmp.ne.s32.totalorder %s111, %s112
      %p121 = scmp.eq.s32.totalorder %s22, 0
      %p122 = por %p120, %p121
      %p123 = scmp.ne.s32.totalorder %s111, %s112
      %p124 = scmp.eq.s32.totalorder %s23, 1
      %p125 = por %p123, %p124
      %p127 = scmp.ne.s32.totalorder %s112, %s126
      %p128 = scmp.eq.s32.totalorder %s23, 0
      %p129 = por %p127, %p128
      %s131 = sadd.s32 %s130, 1
      %p134 = scmp.eq.s32.totalorder %s17, 1
      %p135 = scmp.ne.s32.totalorder %s130, %s132
      %p136 = scmp.eq.s32.totalorder %s17, 0
      %p137 = por %p135, %p136
      %p138 = scmp.ne.s32.totalorder %s130, %s132
      %p139 = scmp.eq.s32.totalorder %s22, 1
      %p140 = por %p138, %p139
      %p141 = scmp.ne.s32.totalorder %s132, %s133
      %p142 = scmp.eq.s32.totalorder %s22, 0
      %p143 = por %p141, %p142
      %p144 = scmp.ne.s32.totalorder %s132, %s133
      %p145 = scmp.eq.s32.totalorder %s23, 1
      %p146 = por %p144, %p145
      %p148 = scmp.ne.s32.totalorder %s133, %s147
      %p149 = scmp.eq.s32.totalorder %s23, 0
      %p150 = por %p148, %p149
      %s151 = ssub.s32 %s17, %s24
      %p152 = scmp.eq.s32.totalorder %s151, 0
      %s154 = sadd.s32 %s153, 1
      %s155 = scalar_select %p152, %s153, %s154
      %p158 = pneg %p152
      %p159 = scmp.eq.s32.totalorder %s17, 1
      %p160 = por %p158, %p159
      %p161 = scmp.ne.s32.totalorder %s153, %s156
      %p162 = scmp.eq.s32.totalorder %s17, 0
      %p163 = por %p161, %p162
      %p164 = scmp.ne.s32.totalorder %s153, %s156
      %p165 = scmp.eq.s32.totalorder %s22, 1
      %p166 = por %p164, %p165
      %p167 = scmp.ne.s32.totalorder %s156, %s157
      %p168 = scmp.eq.s32.totalorder %s22, 0
      %p169 = por %p167, %p168
      %p170 = scmp.ne.s32.totalorder %s156, %s157
      %p171 = scmp.eq.s32.totalorder %s23, 1
      %p172 = por %p170, %p171
      %p174 = scmp.ne.s32.totalorder %s157, %s173
      %p175 = scmp.eq.s32.totalorder %s23, 0
      %p176 = por %p174, %p175
      %p177 = scmp.le.s32.totalorder 1, %s17
      %p178 = scmp.lt.s32.totalorder %s17, 3
      %p179 = pnand %p177, %p178
      %p180 = pneg %p179
      // Predicated region
      $region9: #{tpu_custom_call.1} parent=5 // pred_check
        _
      $region10: #{tpu_custom_call.1} parent=5 // pred_check_branch
        %182 = sbr.rel (%p179) target = $region12
      $region11: #{tpu_custom_call.1} parent=5 // pred_region
        %s183 = ssub.s32 %s17, 1
        // Predicated region
        $region13: #{tpu_custom_call.1} parent=11 // pred_check
          %p184 = pneg %p38
        $region14: #{tpu_custom_call.1} parent=11 // pred_check_branch
          %186 = sbr.rel (%p184) target = $region16
        $region15: #{tpu_custom_call.1} parent=11 // pred_region
          _
        $region16: #{tpu_custom_call.1} parent=11 // pred_fallthru
          _
        // Predicated region
        $region17: #{tpu_custom_call.1} parent=11 // pred_check
          %p187 = pneg %p59
        $region18: #{tpu_custom_call.1} parent=11 // pred_check_branch
          %189 = sbr.rel (%p187) target = $region20
        $region19: #{tpu_custom_call.1} parent=11 // pred_region
          _
        $region20: #{tpu_custom_call.1} parent=11 // pred_fallthru
          _
        // Predicated region
        $region21: #{tpu_custom_call.1} parent=11 // pred_check
          %p190 = pneg %p80
        $region22: #{tpu_custom_call.1} parent=11 // pred_check_branch
          %192 = sbr.rel (%p190) target = $region24
        $region23: #{tpu_custom_call.1} parent=11 // pred_region
          %s194 = ssub.s32 16, 16
          %195 = vsyncadd [#allocation5], %s194
          %s197 = sshll.u32 %s2, 4
          %s198 = int_to_ptr.vmem [resolvable:$true] %s197
          %200 = dma.vmem_to_smem %s198, 16, [#allocation2], [#allocation5]
        $region24: #{tpu_custom_call.1} parent=11 // pred_fallthru
          _
        // Predicated region
        $region25: #{tpu_custom_call.1} parent=11 // pred_check
          %p201 = pneg %p101
        $region26: #{tpu_custom_call.1} parent=11 // pred_check_branch
          %203 = sbr.rel (%p201) target = $region28
        $region27: #{tpu_custom_call.1} parent=11 // pred_region
          _
        $region28: #{tpu_custom_call.1} parent=11 // pred_fallthru
          _
        // Predicated region
        $region29: #{tpu_custom_call.1} parent=11 // pred_check
          %p204 = pneg %p122
        $region30: #{tpu_custom_call.1} parent=11 // pred_check_branch
          %206 = sbr.rel (%p204) target = $region32
        $region31: #{tpu_custom_call.1} parent=11 // pred_region
          %s208 = ssub.s32 1536, 1536
          %209 = vsyncadd [#allocation3], %s208
          %s210 = sshll.u32 [#allocation6], 4
          %s211 = int_to_ptr.vmem [resolvable:$true] %s210
          %216 = dma.hbm_to_vmem [thread:$0]  %s4, 1536, %s211, [#allocation3], 64, 64, 4
        $region32: #{tpu_custom_call.1} parent=11 // pred_fallthru
          _
        // Predicated region
        $region33: #{tpu_custom_call.1} parent=11 // pred_check
          %p217 = pneg %p143
        $region34: #{tpu_custom_call.1} parent=11 // pred_check_branch
          %219 = sbr.rel (%p217) target = $region36
        $region35: #{tpu_custom_call.1} parent=11 // pred_region
          _
        $region36: #{tpu_custom_call.1} parent=11 // pred_fallthru
          _
      $region12: #{tpu_custom_call.1} parent=5 // pred_fallthru
        _
      %p220 = scmp.lt.s32.totalorder %s17, 2
      // Predicated region
      $region37: #{tpu_custom_call.1} parent=5 // pred_check
        %p221 = pneg %p220
      $region38: #{tpu_custom_call.1} parent=5 // pred_check_branch
        %223 = sbr.rel (%p221) target = $region40
      $region39: #{tpu_custom_call.1} parent=5 // pred_region
        _
      $region40: #{tpu_custom_call.1} parent=5 // pred_fallthru
        _
      %p224 = scmp.le.s32.totalorder 1, %s17
      %p225 = scmp.lt.s32.totalorder %s17, 3
      %p226 = pnand %p224, %p225
      %p227 = pneg %p226
      // Predicated region
      $region41: #{tpu_custom_call.1} parent=5 // pred_check
        _
      $region42: #{tpu_custom_call.1} parent=5 // pred_check_branch
        %229 = sbr.rel (%p226) target = $region44
      $region43: #{tpu_custom_call.1} parent=5 // pred_region
        %s230 = ssub.s32 %s17, 1
        // Predicated region
        $region45: #{tpu_custom_call.1} parent=43 // pred_check
          %p231 = pneg %p80
        $region46: #{tpu_custom_call.1} parent=43 // pred_check_branch
          %233 = sbr.rel (%p231) target = $region48
        $region47: #{tpu_custom_call.1} parent=43 // pred_region
          %234 = dma.done [#allocation5], 16
        $region48: #{tpu_custom_call.1} parent=43 // pred_fallthru
          _
        // Predicated region
        $region49: #{tpu_custom_call.1} parent=43 // pred_check
          %p235 = pneg %p122
        $region50: #{tpu_custom_call.1} parent=43 // pred_check_branch
          %237 = sbr.rel (%p235) target = $region52
        $region51: #{tpu_custom_call.1} parent=43 // pred_region
          %238 = dma.done [#allocation3], 1536
        $region52: #{tpu_custom_call.1} parent=43 // pred_fallthru
          _
        %239 = sfence
        %p240 = pneg %p38
        %p241 = pneg %p35
        %p242 = pneg %p59
        %p243 = pneg %p56
        %p244 = pneg %p80
        %p245 = pneg %p77
        %p246 = pneg %p101
        %p247 = pneg %p98
        %p248 = pneg %p122
        %p249 = pneg %p119
        %p250 = pneg %p143
        %p251 = pneg %p140
        %p252 = pneg %p169
        %p253 = pneg %p166
        %s254 = sand.u32 %s156, 1
        %s255 = scalar_lea.sflag [#allocation4], %s254
        %s256 = sand.u32 %s156, 1
        %s257 = scalar_lea.vmem [#allocation7], %s256
        %v259 = vld [vmem:[%s0] sm:$0x1]
        %s260 = sld [smem:[#allocation2 + %s22]]
        %v261 = vstv %s260
        %v262 = vadd.f32 %v259, %v261
        %v263 = vmul.f32 %v262, %v262
        %v264 = vld [vmem:[%s1] sm:$0x7]
        %v266 = vlaneseq
        %v267 = vshrl.u32 %v266, 7
        %v268 = vsub.s32 0, %v267
        %v269 = vrot.slane %v263, %v268
        %v272 = vrot.slane %v264, 6
        %vm274 = vcmask 1040384
        %v275 = vsel %vm274, %v262, %v269
        %vm276 = vcmask 1041408
        %v277 = vsel %vm276, %v275, %v272
        %v278 = vld [vmem:[%s3] sm:$0xff]
        %v279 = vld [vmem:[%s3 + $0x8] sm:$0xff]
        %v280 = vld [vmem:[%s3 + $0x10] sm:$0xff]
        %v281 = vld [vmem:[%s3 + $0x18] sm:$0x1]
        %vm282 = vcmask 39936
        %v284 = vsel %vm282, %v278, 0
        %v287 = vsel %vm282, %v279, 0
        %v290 = vsel %vm282, %v280, 0
        %v293 = vsel %vm282, %v281, 0
        %vm295 = vcmask 1044480
        %v297 = vsel %vm295, %v277, 0
        %299 = vmatprep.subr.mxu0 0.0
        %300 = vmatpush1.msra.mxu0 %v297
        %301 = vmatprep.subr.mxu0 0.0
        %302 = vmatpush1.msra.mxu0 0.0
        %303 = vmatprep.subr.mxu0 0.0
        %304 = vmatpush1.msra.mxu0 0.0
        %305 = vmatprep.subr.mxu0 0.0
        %306 = vmatpush1.msra.mxu0 0.0
        %307 = vmatprep.subr.mxu0 0.0
        %308 = vmatpush1.msra.mxu0 0.0
        %309 = vmatprep.subr.mxu0 0.0
        %310 = vmatpush1.msra.mxu0 0.0
        %311 = vmatprep.subr.mxu0 0.0
        %312 = vmatpush1.msra.mxu0 0.0
        %313 = vmatprep.subr.mxu0 0.0
        %314 = vmatpush1.msra.mxu0 0.0
        %315 = vmatprep.subr.mxu0 0.0
        %316 = vmatpush1.msra.mxu0 0.0
        %317 = vmatprep.subr.mxu0 0.0
        %318 = vmatpush1.msra.mxu0 0.0
        %319 = vmatprep.subr.mxu0 0.0
        %320 = vmatpush1.msra.mxu0 0.0
        %321 = vmatprep.subr.mxu0 0.0
        %322 = vmatpush1.msra.mxu0 0.0
        %323 = vmatprep.subr.mxu0 0.0
        %324 = vmatpush1.msra.mxu0 0.0
        %325 = vmatprep.subr.mxu0 0.0
        %326 = vmatpush1.msra.mxu0 0.0
        %327 = vmatprep.subr.mxu0 0.0
        %328 = vmatpush1.msra.mxu0 0.0
        %329 = vmatprep.subr.mxu0 0.0
        %330 = vmatpush1.msra.mxu0 0.0
        %331 = vmatprep.subr.mxu0 0.0
        %332 = vmatpush1.msra.mxu0 0.0
        %333 = vmatprep.subr.mxu0 0.0
        %334 = vmatpush1.msra.mxu0 0.0
        %335 = vmatprep.subr.mxu0 0.0
        %336 = vmatpush1.msra.mxu0 0.0
        %337 = vmatprep.subr.mxu0 0.0
        %338 = vmatpush1.msra.mxu0 0.0
        %339 = vmatprep.subr.mxu0 0.0
        %340 = vmatpush1.msra.mxu0 0.0
        %341 = vmatprep.subr.mxu0 0.0
        %342 = vmatpush1.msra.mxu0 0.0
        %343 = vmatprep.subr.mxu0 0.0
        %344 = vmatpush1.msra.mxu0 0.0
        %345 = vmatprep.subr.mxu0 0.0
        %346 = vmatpush1.msra.mxu0 0.0
        %347 = vmatprep.subr.mxu0 0.0
        %348 = vmatpush1.msra.mxu0 0.0
        %349 = vmatprep.subr.mxu0 0.0
        %350 = vmatpush1.msra.mxu0 0.0
        %351 = vmatprep.subr.mxu0 0.0
        %352 = vmatpush1.msra.mxu0 0.0
        %353 = vmatprep.subr.mxu0 0.0
        %354 = vmatpush1.msra.mxu0 0.0
        %355 = vmatprep.subr.mxu0 0.0
        %356 = vmatpush1.msra.mxu0 0.0
        %357 = vmatprep.subr.mxu0 0.0
        %358 = vmatpush1.msra.mxu0 0.0
        %359 = vmatprep.subr.mxu0 0.0
        %360 = vmatpush1.msra.mxu0 0.0
        %361 = vmatprep.subr.mxu0 0.0
        %362 = vmatpush1.msra.mxu0 0.0
        %363 = vmatprep.mubr.f32.mxu0 0.0
        %364 = vmatmul.mubr.f32.gmra.mrb[0].mxu0 %v284
        %v365 = vpop.f32.mrb[0].mxu0
        %v366 = vadd.f32 0.0, %v365
        %v367 = vpop.f32.mrb[0].mxu0
        %368 = vmatprep.mubr.f32.mxu0 0.0
        %369 = vmatmul.mubr.f32.gmra.mrb[0].mxu0 %v287
        %v370 = vpop.f32.mrb[0].mxu0
        %v371 = vadd.f32 0.0, %v370
        %v372 = vpop.f32.mrb[0].mxu0
        %373 = vmatprep.mubr.f32.mxu0 0.0
        %374 = vmatmul.mubr.f32.gmra.mrb[0].mxu0 %v290
        %v375 = vpop.f32.mrb[0].mxu0
        %v376 = vadd.f32 0.0, %v375
        %v377 = vpop.f32.mrb[0].mxu0
        %378 = vmatprep.mubr.f32.mxu0 0.0
        %379 = vmatmul.mubr.f32.gmra.mrb[0].mxu0 %v293
        %v380 = vpop.f32.mrb[0].mxu0
        %v381 = vadd.f32 0.0, %v380
        %v382 = vpop.f32.mrb[0].mxu0
        %383 = vdwg.mxu0
        %v384 = vmax.f32 %v366, 0.0
        %v385 = vmax.f32 %v371, 0.0
        %v386 = vmax.f32 %v376, 0.0
        %v387 = vmax.f32 %v381, 0.0
        %v388 = vld [vmem:[#allocation6] sm:$0xf]
        %v389 = vld [vmem:[#allocation6 + $0x4] sm:$0xf]
        %v390 = vld [vmem:[#allocation6 + $0x8] sm:$0xf]
        %v391 = vld [vmem:[#allocation6 + $0xc] sm:$0x1]
        %v392 = vpack.c.bf16 %v385, %v384
        %v393 = vpack.c.bf16 %v387, %v386
        %v398 = vunpack.c.l.b16 %v388
        %v399 = vunpack.c.l.b16 %v389
        %v400 = vunpack.c.l.b16 %v390
        %v401 = vunpack.c.l.b16 %v391
        %v402 = vpack.c.b16 %v399, %v398
        %v403 = vpack.c.b16 %v401, %v400
        %vm404 = vcmask 203776
        %v406 = vsel %vm404, %v402, 0
        %v409 = vsel %vm404, %v403, 0
        %vm411 = vcmask 1043456
        %v412 = vsel %vm411, 4294967295, 65535
        %v413 = vsel %vm295, %v412, 0
        %v415 = vand.u32 %v393, %v413
        %417 = vmatprep.subr.bf16.mxu0 0
        %418 = vmatpush1.bf16.msra.mxu0 %v392
        %419 = vmatprep.subr.bf16.mxu0 0
        %420 = vmatpush1.bf16.msra.mxu0 %v415
        %421 = vmatprep.subr.bf16.mxu0 0
        %422 = vmatpush1.bf16.msra.mxu0 0
        %423 = vmatprep.subr.bf16.mxu0 0
        %424 = vmatpush1.bf16.msra.mxu0 0
        %425 = vmatprep.subr.bf16.mxu0 0
        %426 = vmatpush1.bf16.msra.mxu0 0
        %427 = vmatprep.subr.bf16.mxu0 0
        %428 = vmatpush1.bf16.msra.mxu0 0
        %429 = vmatprep.subr.bf16.mxu0 0
        %430 = vmatpush1.bf16.msra.mxu0 0
        %431 = vmatprep.subr.bf16.mxu0 0
        %432 = vmatpush1.bf16.msra.mxu0 0
        %433 = vmatprep.subr.bf16.mxu0 0
        %434 = vmatpush1.bf16.msra.mxu0 0
        %435 = vmatprep.subr.bf16.mxu0 0
        %436 = vmatpush1.bf16.msra.mxu0 0
        %437 = vmatprep.subr.bf16.mxu0 0
        %438 = vmatpush1.bf16.msra.mxu0 0
        %439 = vmatprep.subr.bf16.mxu0 0
        %440 = vmatpush1.bf16.msra.mxu0 0
        %441 = vmatprep.subr.bf16.mxu0 0
        %442 = vmatpush1.bf16.msra.mxu0 0
        %443 = vmatprep.subr.bf16.mxu0 0
        %444 = vmatpush1.bf16.msra.mxu0 0
        %445 = vmatprep.subr.bf16.mxu0 0
        %446 = vmatpush1.bf16.msra.mxu0 0
        %447 = vmatprep.subr.bf16.mxu0 0
        %448 = vmatpush1.bf16.msra.mxu0 0
        %449 = vmatprep.mubr.bf16.mxu0 0
        %450 = vmatmul.mubr.bf16.gmra.mrb[0].mxu0 %v406
        %v451 = vpop.f32.mrb[0].mxu0
        %v452 = vadd.f32 0.0, %v451
        %v453 = vpop.f32.mrb[0].mxu0
        %v454 = vpop.f32.mrb[0].mxu0
        %v455 = vadd.f32 0.0, %v454
        %v456 = vpop.f32.mrb[0].mxu0
        %457 = vmatprep.mubr.bf16.mxu0 0
        %458 = vmatmul.mubr.bf16.gmra.mrb[0].mxu0 %v409
        %v459 = vpop.f32.mrb[0].mxu0
        %v460 = vadd.f32 0.0, %v459
        %v461 = vpop.f32.mrb[0].mxu0
        %v462 = vpop.f32.mrb[0].mxu0
        %v463 = vadd.f32 0.0, %v462
        %v464 = vpop.f32.mrb[0].mxu0
        %465 = vdwg.mxu0
        %v466 = vmax.f32 %v452, 0.0
        %v467 = vmax.f32 %v455, 0.0
        %v468 = vmax.f32 %v460, 0.0
        %v469 = vmax.f32 %v463, 0.0
        %s470 = scalar_lea.vmem [#allocation6], 16
        %v471 = vld [vmem:[%s470] sm:$0xf]
        %v472 = vld [vmem:[%s470 + $0x4] sm:$0xf]
        %v473 = vld [vmem:[%s470 + $0x8] sm:$0xf]
        %v474 = vld [vmem:[%s470 + $0xc] sm:$0x1]
        %v475 = vpack.c.bf16 %v467, %v466
        %v476 = vpack.c.bf16 %v469, %v468
        %v481 = vunpack.c.l.b16 %v471
        %v482 = vunpack.c.l.b16 %v472
        %v483 = vunpack.c.l.b16 %v473
        %v484 = vunpack.c.l.b16 %v474
        %v485 = vpack.c.b16 %v482, %v481
        %v486 = vpack.c.b16 %v484, %v483
        %v488 = vsel %vm404, %v485, 0
        %v491 = vsel %vm404, %v486, 0
        %v494 = vand.u32 %v476, %v413
        %496 = vmatprep.subr.bf16.mxu0 0
        %497 = vmatpush1.bf16.msra.mxu0 %v475
        %498 = vmatprep.subr.bf16.mxu0 0
        %499 = vmatpush1.bf16.msra.mxu0 %v494
        %500 = vmatprep.subr.bf16.mxu0 0
        %501 = vmatpush1.bf16.msra.mxu0 0
        %502 = vmatprep.subr.bf16.mxu0 0
        %503 = vmatpush1.bf16.msra.mxu0 0
        %504 = vmatprep.subr.bf16.mxu0 0
        %505 = vmatpush1.bf16.msra.mxu0 0
        %506 = vmatprep.subr.bf16.mxu0 0
        %507 = vmatpush1.bf16.msra.mxu0 0
        %508 = vmatprep.subr.bf16.mxu0 0
        %509 = vmatpush1.bf16.msra.mxu0 0
        %510 = vmatprep.subr.bf16.mxu0 0
        %511 = vmatpush1.bf16.msra.mxu0 0
        %512 = vmatprep.subr.bf16.mxu0 0
        %513 = vmatpush1.bf16.msra.mxu0 0
        %514 = vmatprep.subr.bf16.mxu0 0
        %515 = vmatpush1.bf16.msra.mxu0 0
        %516 = vmatprep.subr.bf16.mxu0 0
        %517 = vmatpush1.bf16.msra.mxu0 0
        %518 = vmatprep.subr.bf16.mxu0 0
        %519 = vmatpush1.bf16.msra.mxu0 0
        %520 = vmatprep.subr.bf16.mxu0 0
        %521 = vmatpush1.bf16.msra.mxu0 0
        %522 = vmatprep.subr.bf16.mxu0 0
        %523 = vmatpush1.bf16.msra.mxu0 0
        %524 = vmatprep.subr.bf16.mxu0 0
        %525 = vmatpush1.bf16.msra.mxu0 0
        %526 = vmatprep.subr.bf16.mxu0 0
        %527 = vmatpush1.bf16.msra.mxu0 0
        %528 = vmatprep.mubr.bf16.mxu0 0
        %529 = vmatmul.mubr.bf16.gmra.mrb[0].mxu0 %v488
        %v530 = vpop.f32.mrb[0].mxu0
        %v531 = vadd.f32 0.0, %v530
        %v532 = vpop.f32.mrb[0].mxu0
        %v533 = vpop.f32.mrb[0].mxu0
        %v534 = vadd.f32 0.0, %v533
        %v535 = vpop.f32.mrb[0].mxu0
        %536 = vmatprep.mubr.bf16.mxu0 0
        %537 = vmatmul.mubr.bf16.gmra.mrb[0].mxu0 %v491
        %v538 = vpop.f32.mrb[0].mxu0
        %v539 = vadd.f32 0.0, %v538
        %v540 = vpop.f32.mrb[0].mxu0
        %v541 = vpop.f32.mrb[0].mxu0
        %v542 = vadd.f32 0.0, %v541
        %v543 = vpop.f32.mrb[0].mxu0
        %544 = vdwg.mxu0
        %v545 = vmax.f32 %v531, 0.0
        %v546 = vmax.f32 %v534, 0.0
        %v547 = vmax.f32 %v539, 0.0
        %v548 = vmax.f32 %v542, 0.0
        %s549 = scalar_lea.vmem [#allocation6], 32
        %v550 = vld [vmem:[%s549] sm:$0xf]
        %v551 = vld [vmem:[%s549 + $0x4] sm:$0xf]
        %v552 = vld [vmem:[%s549 + $0x8] sm:$0xf]
        %v553 = vld [vmem:[%s549 + $0xc] sm:$0x1]
        %v554 = vpack.c.bf16 %v546, %v545
        %v555 = vpack.c.bf16 %v548, %v547
        %v560 = vunpack.c.l.b16 %v550
        %v561 = vunpack.c.l.b16 %v551
        %v562 = vunpack.c.l.b16 %v552
        %v563 = vunpack.c.l.b16 %v553
        %v564 = vpack.c.b16 %v561, %v560
        %v565 = vpack.c.b16 %v563, %v562
        %v567 = vsel %vm404, %v564, 0
        %v570 = vsel %vm404, %v565, 0
        %v573 = vand.u32 %v555, %v413
        %575 = vmatprep.subr.bf16.mxu0 0
        %576 = vmatpush1.bf16.msra.mxu0 %v554
        %577 = vmatprep.subr.bf16.mxu0 0
        %578 = vmatpush1.bf16.msra.mxu0 %v573
        %579 = vmatprep.subr.bf16.mxu0 0
        %580 = vmatpush1.bf16.msra.mxu0 0
        %581 = vmatprep.subr.bf16.mxu0 0
        %582 = vmatpush1.bf16.msra.mxu0 0
        %583 = vmatprep.subr.bf16.mxu0 0
        %584 = vmatpush1.bf16.msra.mxu0 0
        %585 = vmatprep.subr.bf16.mxu0 0
        %586 = vmatpush1.bf16.msra.mxu0 0
        %587 = vmatprep.subr.bf16.mxu0 0
        %588 = vmatpush1.bf16.msra.mxu0 0
        %589 = vmatprep.subr.bf16.mxu0 0
        %590 = vmatpush1.bf16.msra.mxu0 0
        %591 = vmatprep.subr.bf16.mxu0 0
        %592 = vmatpush1.bf16.msra.mxu0 0
        %593 = vmatprep.subr.bf16.mxu0 0
        %594 = vmatpush1.bf16.msra.mxu0 0
        %595 = vmatprep.subr.bf16.mxu0 0
        %596 = vmatpush1.bf16.msra.mxu0 0
        %597 = vmatprep.subr.bf16.mxu0 0
        %598 = vmatpush1.bf16.msra.mxu0 0
        %599 = vmatprep.subr.bf16.mxu0 0
        %600 = vmatpush1.bf16.msra.mxu0 0
        %601 = vmatprep.subr.bf16.mxu0 0
        %602 = vmatpush1.bf16.msra.mxu0 0
        %603 = vmatprep.subr.bf16.mxu0 0
        %604 = vmatpush1.bf16.msra.mxu0 0
        %605 = vmatprep.subr.bf16.mxu0 0
        %606 = vmatpush1.bf16.msra.mxu0 0
        %607 = vmatprep.mubr.bf16.mxu0 0
        %608 = vmatmul.mubr.bf16.gmra.mrb[0].mxu0 %v567
        %v609 = vpop.f32.mrb[0].mxu0
        %v610 = vadd.f32 0.0, %v609
        %v611 = vpop.f32.mrb[0].mxu0
        %v612 = vpop.f32.mrb[0].mxu0
        %v613 = vadd.f32 0.0, %v612
        %v614 = vpop.f32.mrb[0].mxu0
        %615 = vmatprep.mubr.bf16.mxu0 0
        %616 = vmatmul.mubr.bf16.gmra.mrb[0].mxu0 %v570
        %v617 = vpop.f32.mrb[0].mxu0
        %v618 = vadd.f32 0.0, %v617
        %v619 = vpop.f32.mrb[0].mxu0
        %v620 = vpop.f32.mrb[0].mxu0
        %v621 = vadd.f32 0.0, %v620
        %v622 = vpop.f32.mrb[0].mxu0
        %623 = vdwg.mxu0
        %v624 = vmax.f32 %v610, 0.0
        %v625 = vmax.f32 %v613, 0.0
        %v626 = vmax.f32 %v618, 0.0
        %v627 = vmax.f32 %v621, 0.0
        %s628 = scalar_lea.vmem [#allocation6], 48
        %v629 = vld [vmem:[%s628] sm:$0xf]
        %v630 = vld [vmem:[%s628 + $0x4] sm:$0xf]
        %v631 = vld [vmem:[%s628 + $0x8] sm:$0xf]
        %v632 = vld [vmem:[%s628 + $0xc] sm:$0x1]
        %v633 = vpack.c.bf16 %v625, %v624
        %v634 = vpack.c.bf16 %v627, %v626
        %v639 = vunpack.c.l.b16 %v629
        %v640 = vunpack.c.l.b16 %v630
        %v641 = vunpack.c.l.b16 %v631
        %v642 = vunpack.c.l.b16 %v632
        %v643 = vpack.c.b16 %v640, %v639
        %v644 = vpack.c.b16 %v642, %v641
        %v646 = vsel %vm404, %v643, 0
        %v649 = vsel %vm404, %v644, 0
        %v652 = vand.u32 %v634, %v413
        %654 = vmatprep.subr.bf16.mxu0 0
        %655 = vmatpush1.bf16.msra.mxu0 %v633
        %656 = vmatprep.subr.bf16.mxu0 0
        %657 = vmatpush1.bf16.msra.mxu0 %v652
        %658 = vmatprep.subr.bf16.mxu0 0
        %659 = vmatpush1.bf16.msra.mxu0 0
        %660 = vmatprep.subr.bf16.mxu0 0
        %661 = vmatpush1.bf16.msra.mxu0 0
        %662 = vmatprep.subr.bf16.mxu0 0
        %663 = vmatpush1.bf16.msra.mxu0 0
        %664 = vmatprep.subr.bf16.mxu0 0
        %665 = vmatpush1.bf16.msra.mxu0 0
        %666 = vmatprep.subr.bf16.mxu0 0
        %667 = vmatpush1.bf16.msra.mxu0 0
        %668 = vmatprep.subr.bf16.mxu0 0
        %669 = vmatpush1.bf16.msra.mxu0 0
        %670 = vmatprep.subr.bf16.mxu0 0
        %671 = vmatpush1.bf16.msra.mxu0 0
        %672 = vmatprep.subr.bf16.mxu0 0
        %673 = vmatpush1.bf16.msra.mxu0 0
        %674 = vmatprep.subr.bf16.mxu0 0
        %675 = vmatpush1.bf16.msra.mxu0 0
        %676 = vmatprep.subr.bf16.mxu0 0
        %677 = vmatpush1.bf16.msra.mxu0 0
        %678 = vmatprep.subr.bf16.mxu0 0
        %679 = vmatpush1.bf16.msra.mxu0 0
        %680 = vmatprep.subr.bf16.mxu0 0
        %681 = vmatpush1.bf16.msra.mxu0 0
        %682 = vmatprep.subr.bf16.mxu0 0
        %683 = vmatpush1.bf16.msra.mxu0 0
        %684 = vmatprep.subr.bf16.mxu0 0
        %685 = vmatpush1.bf16.msra.mxu0 0
        %686 = vmatprep.mubr.bf16.mxu0 0
        %687 = vmatmul.mubr.bf16.gmra.mrb[0].mxu0 %v646
        %v688 = vpop.f32.mrb[0].mxu0
        %v689 = vadd.f32 0.0, %v688
        %v690 = vpop.f32.mrb[0].mxu0
        %v691 = vpop.f32.mrb[0].mxu0
        %v692 = vadd.f32 0.0, %v691
        %v693 = vpop.f32.mrb[0].mxu0
        %694 = vmatprep.mubr.bf16.mxu0 0
        %695 = vmatmul.mubr.bf16.gmra.mrb[0].mxu0 %v649
        %v696 = vpop.f32.mrb[0].mxu0
        %v697 = vadd.f32 0.0, %v696
        %v698 = vpop.f32.mrb[0].mxu0
        %v699 = vpop.f32.mrb[0].mxu0
        %v700 = vadd.f32 0.0, %v699
        %v701 = vpop.f32.mrb[0].mxu0
        %702 = vdwg.mxu0
        %v703 = vmax.f32 %v689, 0.0
        %v704 = vmax.f32 %v692, 0.0
        %v705 = vmax.f32 %v697, 0.0
        %v706 = vmax.f32 %v700, 0.0
        %s707 = scalar_lea.vmem [#allocation6], 64
        %v708 = vld [vmem:[%s707] sm:$0xf]
        %v709 = vld [vmem:[%s707 + $0x4] sm:$0xf]
        %v710 = vld [vmem:[%s707 + $0x8] sm:$0xf]
        %v711 = vld [vmem:[%s707 + $0xc] sm:$0x1]
        %v712 = vpack.c.bf16 %v704, %v703
        %v713 = vpack.c.bf16 %v706, %v705
        %v718 = vunpack.c.l.b16 %v708
        %v719 = vunpack.c.l.b16 %v709
        %v720 = vunpack.c.l.b16 %v710
        %v721 = vunpack.c.l.b16 %v711
        %v722 = vpack.c.b16 %v719, %v718
        %v723 = vpack.c.b16 %v721, %v720
        %v725 = vsel %vm404, %v722, 0
        %v728 = vsel %vm404, %v723, 0
        %v731 = vand.u32 %v713, %v413
        %733 = vmatprep.subr.bf16.mxu0 0
        %734 = vmatpush1.bf16.msra.mxu0 %v712
        %735 = vmatprep.subr.bf16.mxu0 0
        %736 = vmatpush1.bf16.msra.mxu0 %v731
        %737 = vmatprep.subr.bf16.mxu0 0
        %738 = vmatpush1.bf16.msra.mxu0 0
        %739 = vmatprep.subr.bf16.mxu0 0
        %740 = vmatpush1.bf16.msra.mxu0 0
        %741 = vmatprep.subr.bf16.mxu0 0
        %742 = vmatpush1.bf16.msra.mxu0 0
        %743 = vmatprep.subr.bf16.mxu0 0
        %744 = vmatpush1.bf16.msra.mxu0 0
        %745 = vmatprep.subr.bf16.mxu0 0
        %746 = vmatpush1.bf16.msra.mxu0 0
        %747 = vmatprep.subr.bf16.mxu0 0
        %748 = vmatpush1.bf16.msra.mxu0 0
        %749 = vmatprep.subr.bf16.mxu0 0
        %750 = vmatpush1.bf16.msra.mxu0 0
        %751 = vmatprep.subr.bf16.mxu0 0
        %752 = vmatpush1.bf16.msra.mxu0 0
        %753 = vmatprep.subr.bf16.mxu0 0
        %754 = vmatpush1.bf16.msra.mxu0 0
        %755 = vmatprep.subr.bf16.mxu0 0
        %756 = vmatpush1.bf16.msra.mxu0 0
        %757 = vmatprep.subr.bf16.mxu0 0
        %758 = vmatpush1.bf16.msra.mxu0 0
        %759 = vmatprep.subr.bf16.mxu0 0
        %760 = vmatpush1.bf16.msra.mxu0 0
        %761 = vmatprep.subr.bf16.mxu0 0
        %762 = vmatpush1.bf16.msra.mxu0 0
        %763 = vmatprep.subr.bf16.mxu0 0
        %764 = vmatpush1.bf16.msra.mxu0 0
        %765 = vmatprep.mubr.bf16.mxu0 0
        %766 = vmatmul.mubr.bf16.gmra.mrb[0].mxu0 %v725
        %v767 = vpop.f32.mrb[0].mxu0
        %v768 = vadd.f32 0.0, %v767
        %v769 = vpop.f32.mrb[0].mxu0
        %v770 = vpop.f32.mrb[0].mxu0
        %v771 = vadd.f32 0.0, %v770
        %v772 = vpop.f32.mrb[0].mxu0
        %773 = vmatprep.mubr.bf16.mxu0 0
        %774 = vmatmul.mubr.bf16.gmra.mrb[0].mxu0 %v728
        %v775 = vpop.f32.mrb[0].mxu0
        %v776 = vadd.f32 0.0, %v775
        %v777 = vpop.f32.mrb[0].mxu0
        %v778 = vpop.f32.mrb[0].mxu0
        %v779 = vadd.f32 0.0, %v778
        %v780 = vpop.f32.mrb[0].mxu0
        %781 = vdwg.mxu0
        %v782 = vmax.f32 %v768, 0.0
        %v783 = vmax.f32 %v771, 0.0
        %v784 = vmax.f32 %v776, 0.0
        %v785 = vmax.f32 %v779, 0.0
        %s786 = scalar_lea.vmem [#allocation6], 80
        %v787 = vld [vmem:[%s786] sm:$0xf]
        %v788 = vld [vmem:[%s786 + $0x4] sm:$0xf]
        %v789 = vld [vmem:[%s786 + $0x8] sm:$0xf]
        %v790 = vld [vmem:[%s786 + $0xc] sm:$0x1]
        %v791 = vpack.c.bf16 %v783, %v782
        %v792 = vpack.c.bf16 %v785, %v784
        %v797 = vunpack.c.l.b16 %v787
        %v798 = vunpack.c.l.b16 %v788
        %v799 = vunpack.c.l.b16 %v789
        %v800 = vunpack.c.l.b16 %v790
        %v801 = vpack.c.b16 %v798, %v797
        %v802 = vpack.c.b16 %v800, %v799
        %v804 = vsel %vm404, %v801, 0
        %v807 = vsel %vm404, %v802, 0
        %v810 = vand.u32 %v792, %v413
        %812 = vmatprep.subr.bf16.mxu0 0
        %813 = vmatpush1.bf16.msra.mxu0 %v791
        %814 = vmatprep.subr.bf16.mxu0 0
        %815 = vmatpush1.bf16.msra.mxu0 %v810
        %816 = vmatprep.subr.bf16.mxu0 0
        %817 = vmatpush1.bf16.msra.mxu0 0
        %818 = vmatprep.subr.bf16.mxu0 0
        %819 = vmatpush1.bf16.msra.mxu0 0
        %820 = vmatprep.subr.bf16.mxu0 0
        %821 = vmatpush1.bf16.msra.mxu0 0
        %822 = vmatprep.subr.bf16.mxu0 0
        %823 = vmatpush1.bf16.msra.mxu0 0
        %824 = vmatprep.subr.bf16.mxu0 0
        %825 = vmatpush1.bf16.msra.mxu0 0
        %826 = vmatprep.subr.bf16.mxu0 0
        %827 = vmatpush1.bf16.msra.mxu0 0
        %828 = vmatprep.subr.bf16.mxu0 0
        %829 = vmatpush1.bf16.msra.mxu0 0
        %830 = vmatprep.subr.bf16.mxu0 0
        %831 = vmatpush1.bf16.msra.mxu0 0
        %832 = vmatprep.subr.bf16.mxu0 0
        %833 = vmatpush1.bf16.msra.mxu0 0
        %834 = vmatprep.subr.bf16.mxu0 0
        %835 = vmatpush1.bf16.msra.mxu0 0
        %836 = vmatprep.subr.bf16.mxu0 0
        %837 = vmatpush1.bf16.msra.mxu0 0
        %838 = vmatprep.subr.bf16.mxu0 0
        %839 = vmatpush1.bf16.msra.mxu0 0
        %840 = vmatprep.subr.bf16.mxu0 0
        %841 = vmatpush1.bf16.msra.mxu0 0
        %842 = vmatprep.subr.bf16.mxu0 0
        %843 = vmatpush1.bf16.msra.mxu0 0
        %844 = vmatprep.mubr.bf16.mxu0 0
        %845 = vmatmul.mubr.bf16.gmra.mrb[0].mxu0 %v804
        %v846 = vpop.f32.mrb[0].mxu0
        %v847 = vadd.f32 0.0, %v846
        %v848 = vpop.f32.mrb[0].mxu0
        %v849 = vpop.f32.mrb[0].mxu0
        %v850 = vadd.f32 0.0, %v849
        %v851 = vpop.f32.mrb[0].mxu0
        %852 = vmatprep.mubr.bf16.mxu0 0
        %853 = vmatmul.mubr.bf16.gmra.mrb[0].mxu0 %v807
        %v854 = vpop.f32.mrb[0].mxu0
        %v855 = vadd.f32 0.0, %v854
        %v856 = vpop.f32.mrb[0].mxu0
        %v857 = vpop.f32.mrb[0].mxu0
        %v858 = vadd.f32 0.0, %v857
        %v859 = vpop.f32.mrb[0].mxu0
        %860 = vdwg.mxu0
        %v861 = vmax.f32 %v847, 0.0
        %v862 = vmax.f32 %v850, 0.0
        %v863 = vmax.f32 %v855, 0.0
        %v864 = vmax.f32 %v858, 0.0
        %v865 = vld [vmem:[%s5] sm:$0x1]
        %v866 = vpack.c.bf16 %v862, %v861
        %v867 = vpack.c.bf16 %v864, %v863
        %v869 = vsel %vm404, %v865, 0
        %v872 = vand.u32 %v867, %v413
        %874 = vmatprep.subr.bf16.mxu0 0
        %875 = vmatpush1.bf16.msra.mxu0 %v866
        %876 = vmatprep.subr.bf16.mxu0 0
        %877 = vmatpush1.bf16.msra.mxu0 %v872
        %878 = vmatprep.subr.bf16.mxu0 0
        %879 = vmatpush1.bf16.msra.mxu0 0
        %880 = vmatprep.subr.bf16.mxu0 0
        %881 = vmatpush1.bf16.msra.mxu0 0
        %882 = vmatprep.subr.bf16.mxu0 0
        %883 = vmatpush1.bf16.msra.mxu0 0
        %884 = vmatprep.subr.bf16.mxu0 0
        %885 = vmatpush1.bf16.msra.mxu0 0
        %886 = vmatprep.subr.bf16.mxu0 0
        %887 = vmatpush1.bf16.msra.mxu0 0
        %888 = vmatprep.subr.bf16.mxu0 0
        %889 = vmatpush1.bf16.msra.mxu0 0
        %890 = vmatprep.subr.bf16.mxu0 0
        %891 = vmatpush1.bf16.msra.mxu0 0
        %892 = vmatprep.subr.bf16.mxu0 0
        %893 = vmatpush1.bf16.msra.mxu0 0
        %894 = vmatprep.subr.bf16.mxu0 0
        %895 = vmatpush1.bf16.msra.mxu0 0
        %896 = vmatprep.subr.bf16.mxu0 0
        %897 = vmatpush1.bf16.msra.mxu0 0
        %898 = vmatprep.subr.bf16.mxu0 0
        %899 = vmatpush1.bf16.msra.mxu0 0
        %900 = vmatprep.subr.bf16.mxu0 0
        %901 = vmatpush1.bf16.msra.mxu0 0
        %902 = vmatprep.subr.bf16.mxu0 0
        %903 = vmatpush1.bf16.msra.mxu0 0
        %904 = vmatprep.subr.bf16.mxu0 0
        %905 = vmatpush1.bf16.msra.mxu0 0
        %906 = vmatprep.mubr.bf16.mxu0 0
        %907 = vmatmul.mubr.bf16.gmra.mrb[0].mxu0 %v869
        %v908 = vpop.f32.mrb[0].mxu0
        %v909 = vadd.f32 0.0, %v908
        %v910 = vpop.f32.mrb[0].mxu0
        %v911 = vpop.f32.mrb[0].mxu0
        %v912 = vpop.f32.mrb[0].mxu0
        %913 = vdwg.mxu0
        %v914 = vxor.u32 %v909, 2147483648
        %v915 = vmul.f32 %v914, 1.442695
        %v916 = vpow.pop %v915
        %v917 = vadd.f32 %v916, 1.0
        %v918 = vrcp.pop %v917
        %v919 = vmul.f32 1.0, %v918
        %920 = vst [vmem:[%s257] sm:$0x1] %v919
        %s921 = sand.u32 %s156, 1
        %s922 = scalar_lea.sflag [#allocation4], %s921
        %s923 = sand.u32 %s156, 1
        %s924 = scalar_lea.vmem [#allocation7], %s923
        // Predicated region
        $region53: #{tpu_custom_call.1} parent=43 // pred_check
          %p925 = pneg %p166
        $region54: #{tpu_custom_call.1} parent=43 // pred_check_branch
          %927 = sbr.rel (%p925) target = $region56
        $region55: #{tpu_custom_call.1} parent=43 // pred_region
          %s929 = ssub.s32 16, 16
          %930 = vsyncadd %s922, %s929
          %s931 = smul.addr %s22, 16
          %s932 = scalar_lea.hbm %s6, %s931
          %s934 = sshll.u32 %s924, 4
          %s935 = int_to_ptr.vmem [resolvable:$true] %s934
          %937 = dma.vmem_to_hbm [thread:$0]  %s935, 16, %s932, %s922
        $region56: #{tpu_custom_call.1} parent=43 // pred_fallthru
          _
      $region44: #{tpu_custom_call.1} parent=5 // pred_fallthru
        _
      %p938 = scmp.le.s32.totalorder 2, %s17
      // Predicated region
      $region57: #{tpu_custom_call.1} parent=5 // pred_check
        %p939 = pneg %p938
      $region58: #{tpu_custom_call.1} parent=5 // pred_check_branch
        %941 = sbr.rel (%p939) target = $region60
      $region59: #{tpu_custom_call.1} parent=5 // pred_region
        %s942 = ssub.s32 %s17, 2
        // Predicated region
        $region61: #{tpu_custom_call.1} parent=59 // pred_check
          %p943 = pneg %p172
        $region62: #{tpu_custom_call.1} parent=59 // pred_check_branch
          %945 = sbr.rel (%p943) target = $region64
        $region63: #{tpu_custom_call.1} parent=59 // pred_region
          %s946 = sand.u32 %s157, 1
          %s947 = scalar_lea.sflag [#allocation4], %s946
          %s948 = sand.u32 %s157, 1
          %s949 = scalar_lea.vmem [#allocation7], %s948
          %950 = dma.done %s947, 16
        $region64: #{tpu_custom_call.1} parent=59 // pred_fallthru
          _
      $region60: #{tpu_custom_call.1} parent=5 // pred_fallthru
        _
    $region6: #{tpu_custom_call.1} parent=1 // loop_footer
      %s21 = sadd.s32 1, %s17
    $region7: #{tpu_custom_call.1} parent=1 // loop_footer_branch
      %16 = sbr.rel target = $region3
    $region8: #{tpu_custom_call.1} parent=1 // loop_exit
      _
    %951 = vsyncpa [#allocation3], 1
    %s952 = scalar_lea.sflag [#allocation3], 1
    %953 = vsyncpa %s952, 1
    %954 = vsyncpa [#allocation4], 1
    %s955 = scalar_lea.sflag [#allocation4], 1
    %956 = vsyncpa %s955, 1
    %957 = vsyncpa [#allocation5], 1
    %s958 = scalar_lea.sflag [#allocation5], 1
    %959 = vsyncpa %s958, 1

</llo_original>
